<compile_context>
chip_gen: v6e
topology: v6e:2x2x1
jax: 0.10.0
libtpu: 0.0.40
codegen_flags: <defaults>
</compile_context>

<pallas_src>
import functools

import jax
import jax.numpy as jnp
from jax.experimental import pallas as pl
from jax.experimental.pallas import tpu as pltpu


def _round_up(v, m):
    return ((v + m - 1) // m) * m


def _pad2d(arr, rows, cols):
    r, c = arr.shape
    if r == rows and c == cols:
        return arr
    return jnp.pad(arr, ((0, rows - r), (0, cols - c)))


def _vmem_capacity_bytes():
    """Per-core VMEM capacity; conservative (v7x) fallback if the query fails."""
    try:
        return int(pltpu.get_tpu_info().vmem_capacity_bytes)
    except Exception:
        return 64 * 1024 * 1024


# ---------------------------------------------------------------------------
# Fused small-graph path: one grid-less pallas_call per layer, everything
# VMEM-resident.  out = (relu?)(A @ (H @ W)) (+ H).
# ---------------------------------------------------------------------------
def _fused_layer_kernel(a_ref, h_ref, w_ref, o_ref, *, apply_relu, residual):
    # H, W, A are bf16; both matmuls take the bf16 MXU path with f32 accumulation.
    xw = jnp.dot(h_ref[...], w_ref[...], preferred_element_type=jnp.float32)
    out = jnp.dot(a_ref[...], xw.astype(jnp.bfloat16),
                  preferred_element_type=jnp.float32)
    if apply_relu:
        out = jnp.maximum(out, 0.0)
    if residual:
        # Module semantics: x = relu(conv(x)) + x (residual added AFTER relu).
        out = out + h_ref[...].astype(jnp.float32)
    o_ref[...] = out.astype(o_ref.dtype)


def _fused_layer(a, h, w, *, apply_relu, residual, out_dtype, vmem_limit):
    n_pad = a.shape[0]
    f_out_pad = w.shape[1]
    kernel = functools.partial(_fused_layer_kernel, apply_relu=apply_relu,
                               residual=residual)
    # No grid / no BlockSpecs: whole arrays live in VMEM for this call.
    return pl.pallas_call(
        kernel,
        out_shape=jax.ShapeDtypeStruct((n_pad, f_out_pad), out_dtype),
        compiler_params=pltpu.CompilerParams(vmem_limit_bytes=vmem_limit),
    )(a, h, w)


# ---------------------------------------------------------------------------
# Tiled path, stage 1: XW = X @ W (bf16 out), large row tiles, hoisted out of
# the aggregation loop so it runs exactly once per layer.
# ---------------------------------------------------------------------------
def _xw_kernel(x_ref, w_ref, o_ref):
    o_ref[...] = jnp.dot(
        x_ref[...], w_ref[...], preferred_element_type=jnp.float32
    ).astype(o_ref.dtype)


def _xw_matmul(x, w, *, tm, vmem_limit):
    n_pad, f_in_pad = x.shape
    f_out_pad = w.shape[1]
    return pl.pallas_call(
        _xw_kernel,
        out_shape=jax.ShapeDtypeStruct((n_pad, f_out_pad), jnp.bfloat16),
        grid_spec=pltpu.PrefetchScalarGridSpec(
            num_scalar_prefetch=0,
            grid=(n_pad // tm,),
            in_specs=[
                pl.BlockSpec((tm, f_in_pad), lambda i: (i, 0)),         # X row tile
                pl.BlockSpec((f_in_pad, f_out_pad), lambda i: (0, 0)),  # full W (small)
            ],
            out_specs=pl.BlockSpec((tm, f_out_pad), lambda i: (i, 0)),
        ),
        compiler_params=pltpu.CompilerParams(
            dimension_semantics=("parallel",),
            vmem_limit_bytes=vmem_limit,
        ),
    )(x, w)


# ---------------------------------------------------------------------------
# Tiled path, stage 2: out = (relu?)(A @ XW) (+ residual), tiled over
# (row tiles [parallel], K tiles [reduction]).  XW either VMEM-resident
# (constant index_map, sliced in-kernel) or streamed per K tile.
# ---------------------------------------------------------------------------
def _aggregate_kernel(*refs, apply_relu, residual, resident_xw, tk):
    if residual:
        a_ref, xw_ref, res_ref, o_ref, acc_ref = refs
    else:
        a_ref, xw_ref, o_ref, acc_ref = refs
        res_ref = None

    k = pl.program_id(1)

    @pl.when(k == 0)
    def _init():
        acc_ref[...] = jnp.zeros_like(acc_ref)

    if resident_xw:
        start = pl.multiple_of(k * tk, tk)
        xw_blk = xw_ref[pl.ds(start, tk), :]
    else:
        xw_blk = xw_ref[...]

    # bf16 x bf16 on the MXU, f32 accumulation.
    acc_ref[...] += jnp.dot(a_ref[...], xw_blk,
                            preferred_element_type=jnp.float32)

    @pl.when(k == pl.num_programs(1) - 1)
    def _epilogue():
        out = acc_ref[...]
        if apply_relu:
            out = jnp.maximum(out, 0.0)
        if residual:
            out = out + res_ref[...].astype(jnp.float32)
        o_ref[...] = out.astype(o_ref.dtype)


def _aggregate(a, xw, res, *, apply_relu, residual, out_dtype, tm, tk,
               resident_xw, vmem_limit):
    n_pad = a.shape[0]
    f_out_pad = xw.shape[1]
    grid = (n_pad // tm, n_pad // tk)

    in_specs = [pl.BlockSpec((tm, tk), lambda i, k: (i, k))]        # A tile (bf16)
    if resident_xw:
        # Whole XW stays resident across the grid (index_map constant).
        in_specs.append(pl.BlockSpec((n_pad, f_out_pad), lambda i, k: (0, 0)))
    else:
        in_specs.append(pl.BlockSpec((tk, f_out_pad), lambda i, k: (k, 0)))
    inputs = [a, xw]
    if residual:
        in_specs.append(pl.BlockSpec((tm, res.shape[1]), lambda i, k: (i, 0)))
        inputs.append(res)

    kernel = functools.partial(_aggregate_kernel, apply_relu=apply_relu,
                               residual=residual, resident_xw=resident_xw, tk=tk)
    return pl.pallas_call(
        kernel,
        out_shape=jax.ShapeDtypeStruct((n_pad, f_out_pad), out_dtype),
        grid_spec=pltpu.PrefetchScalarGridSpec(
            num_scalar_prefetch=0,
            grid=grid,
            in_specs=in_specs,
            out_specs=pl.BlockSpec((tm, f_out_pad), lambda i, k: (i, 0)),
            scratch_shapes=[pltpu.VMEM((tm, f_out_pad), jnp.float32)],
        ),
        compiler_params=pltpu.CompilerParams(
            # rows independent -> "parallel" (megacore on v7x); K -> reduction.
            dimension_semantics=("parallel", "arbitrary"),
            vmem_limit_bytes=vmem_limit,
        ),
    )(*inputs)


# ---------------------------------------------------------------------------
# GCN module (parameters + forward wrapper)
# ---------------------------------------------------------------------------
def init_gcn_params(key, input_size, hidden_size, output_size, num_hidden_layers):
    """Deterministic init matching nn.Linear(bias=False); weights stored [F_in, F_out]."""
    def linear_w(k, f_in, f_out):
        bound = 1.0 / jnp.sqrt(jnp.asarray(f_in, jnp.float32))
        return jax.random.uniform(k, (f_in, f_out), jnp.float32, -bound, bound)

    keys = jax.random.split(key, 2 + num_hidden_layers)
    return {
        "input_conv": linear_w(keys[0], input_size, hidden_size),
        "hidden_convs": [
            linear_w(keys[2 + i], hidden_size, hidden_size)
            for i in range(num_hidden_layers)
        ],
        "output_conv": linear_w(keys[1], hidden_size, output_size),
    }


def gcn_forward(params, x, adjacency_hat, labels=None, *, residual=False,
                force_tiled=False, force_stream_xw=False):
    """Matches GCN.forward in eval mode (dropout == identity)."""
    n, f_in = x.shape
    f_hidden = params["input_conv"].shape[1]
    f_out = params["output_conv"].shape[1]

    capacity = _vmem_capacity_bytes()
    vmem_limit = max(32 * 1024 * 1024,
                     min(int(0.75 * capacity), 100 * 1024 * 1024))

    f_in_pad = _round_up(f_in, 128)
    f_hid_pad = _round_up(f_hidden, 128)
    f_out_pad = _round_up(f_out, 128)
    f_max_pad = max(f_in_pad, f_hid_pad, f_out_pad)

    # ---- path selection (generation-aware via VMEM capacity) ---------------
    n_pad_small = _round_up(n, 128)
    fused_bytes = (2 * n_pad_small * n_pad_small      # A (bf16)
                   + 2 * n_pad_small * f_max_pad      # H (bf16)
                   + 2 * f_max_pad * f_max_pad        # W (bf16)
                   + 4 * n_pad_small * f_max_pad)     # out (worst case f32)
    use_fused = (not force_tiled) and fused_bytes <= int(0.6 * vmem_limit)

    if use_fused:
        n_pad = n_pad_small
        tm = tk = tm_xw = None
    else:
        # Pad N so the big tiles always apply and n_pad//tm >= 2 (v7x megacore).
        n_pad = _round_up(n, 512)
        tm = 512 if n_pad >= 1024 else 256
        tk = 1024 if n_pad % 1024 == 0 else 512
        tm_xw = 1024 if n_pad % 1024 == 0 else 512    # stage-1 tile, decoupled from tm

    # Cast + pad the dense normalized adjacency ONCE (bf16 halves the dominant
    # N^2 HBM traffic); it is reused unchanged by every layer.
    a_pad = _pad2d(adjacency_hat, n_pad, n_pad).astype(jnp.bfloat16)

    # F.dropout(x, p, training=False) -> identity.
    h = _pad2d(x, n_pad, f_in_pad).astype(jnp.bfloat16)

    def prep_w(w, rows, cols):
        return _pad2d(w, rows, cols).astype(jnp.bfloat16)

    def layer(h_cur, w_pad, *, apply_relu, residual_flag, out_dtype):
        if use_fused:
            return _fused_layer(a_pad, h_cur, w_pad, apply_relu=apply_relu,
                                residual=residual_flag, out_dtype=out_dtype,
                                vmem_limit=vmem_limit)
        xw = _xw_matmul(h_cur, w_pad, tm=tm_xw, vmem_limit=vmem_limit)
        fo = xw.shape[1]
        out_bytes = 2 if out_dtype == jnp.bfloat16 else 4
        # Budget for the resident-XW fast path (double-buffered tiles + XW + acc).
        resident_bytes = (2 * (2 * xw.shape[0] * fo)          # XW (x2 buffers)
                          + 2 * (tm * tk * 2)                 # A tiles
                          + 2 * (tm * fo * out_bytes)         # out tiles
                          + (2 * (tm * h_cur.shape[1] * 2) if residual_flag else 0)
                          + tm * fo * 4)                      # f32 accumulator
        resident = (not force_stream_xw) and resident_bytes <= int(0.8 * vmem_limit)
        return _aggregate(a_pad, xw, h_cur if residual_flag else None,
                          apply_relu=apply_relu, residual=residual_flag,
                          out_dtype=out_dtype, tm=tm, tk=tk,
                          resident_xw=resident, vmem_limit=vmem_limit)

    # input layer: relu(A @ (X @ W_in)); hidden activations kept in bf16.
    w_in = prep_w(params["input_conv"], f_in_pad, f_hid_pad)
    h = layer(h, w_in, apply_relu=True, residual_flag=False, out_dtype=jnp.bfloat16)

    for w in params["hidden_convs"]:
        w_h = prep_w(w, f_hid_pad, f_hid_pad)
        h = layer(h, w_h, apply_relu=True, residual_flag=residual,
                  out_dtype=jnp.bfloat16)

    # second eval-mode dropout -> identity; final layer: no relu, f32 logits.
    w_out = prep_w(params["output_conv"], f_hid_pad, f_out_pad)
    logits_pad = layer(h, w_out, apply_relu=False, residual_flag=False,
                       out_dtype=jnp.float32)
    logits = logits_pad[:n, :f_out]

    if labels is None:
        return logits
    # Cross-entropy (glue, plain JAX) — matches nn.CrossEntropyLoss mean reduction.
    logp = jax.nn.log_softmax(logits, axis=-1)
    loss = -jnp.mean(jnp.take_along_axis(logp, labels[:, None], axis=-1))
    return logits, loss


# ---------------------------------------------------------------------------
def _make_graph(key, n, density_thresh=0.6):
    adj = (jax.random.uniform(key, (n, n)) > density_thresh).astype(jnp.float32)
    adj = jnp.maximum(adj, adj.T)                 # symmetric
    adj = adj + jnp.eye(n, dtype=jnp.float32)     # self loops
    deg = jnp.sum(adj, axis=1)
    d_inv_sqrt = 1.0 / jnp.sqrt(deg)
    return adj * d_inv_sqrt[:, None] * d_inv_sqrt[None, :]


def _ref_forward(params, x, a, residual):
    h = jnp.maximum(a @ (x @ params["input_conv"]), 0.0)
    for w in params["hidden_convs"]:
        hn = jnp.maximum(a @ (h @ w), 0.0)
        h = hn + h if residual else hn
    return a @ (h @ params["output_conv"])


if __name__ == "__main__":
    key = jax.random.PRNGKey(0)
    (k_x, k_adj, k_par, k_lab, k_x2, k_adj2, k_x3, k_adj3) = jax.random.split(key, 8)

    INPUT_SIZE = 16
    HIDDEN_SIZE = 32
    OUTPUT_SIZE = 4
    NUM_HIDDEN_LAYERS = 1

    params = init_gcn_params(k_par, INPUT_SIZE, HIDDEN_SIZE, OUTPUT_SIZE,
                             NUM_HIDDEN_LAYERS)

    # ---- small graph: fused single-block path -------------------------------
    N = 8
    x = jax.random.normal(k_x, (N, INPUT_SIZE), jnp.float32)
    adjacency_hat = _make_graph(k_adj, N)
    labels = jax.random.randint(k_lab, (N,), 0, OUTPUT_SIZE)

    logits = jax.block_until_ready(gcn_forward(params, x, adjacency_hat, residual=False))
    logits_res = jax.block_until_ready(gcn_forward(params, x, adjacency_hat, residual=True))
    _, loss = gcn_forward(params, x, adjacency_hat, labels, residual=False)
    loss = jax.block_until_ready(loss)

    ref = _ref_forward(params, x, adjacency_hat, False)
    ref_res = _ref_forward(params, x, adjacency_hat, True)
    assert logits.shape == (N, OUTPUT_SIZE)
    assert jnp.allclose(logits, ref, atol=5e-2, rtol=5e-2)
    assert jnp.allclose(logits_res, ref_res, atol=5e-2, rtol=5e-2)
    assert jnp.isfinite(loss)

    # ---- medium graph: still fused ------------------------------------------
    N2 = 300
    x2 = jax.random.normal(k_x2, (N2, INPUT_SIZE), jnp.float32)
    adjacency_hat2 = _make_graph(k_adj2, N2)
    logits2 = jax.block_until_ready(gcn_forward(params, x2, adjacency_hat2, residual=True))
    ref2 = _ref_forward(params, x2, adjacency_hat2, True)
    assert logits2.shape == (N2, OUTPUT_SIZE)
    assert jnp.allclose(logits2, ref2, atol=5e-2, rtol=5e-2)

    # ---- larger graph forced onto the tiled / pipelined path ----------------
    N3 = 1200
    x3 = jax.random.normal(k_x3, (N3, INPUT_SIZE), jnp.float32)
    adjacency_hat3 = _make_graph(k_adj3, N3)
    ref3 = _ref_forward(params, x3, adjacency_hat3, True)

    # resident-XW variant (default when it fits VMEM)
    logits3 = jax.block_until_ready(
        gcn_forward(params, x3, adjacency_hat3, residual=True, force_tiled=True))
    assert logits3.shape == (N3, OUTPUT_SIZE)
    assert jnp.allclose(logits3, ref3, atol=5e-2, rtol=5e-2)

    # streamed-XW variant (large-N fallback path)
    logits3s = jax.block_until_ready(
        gcn_forward(params, x3, adjacency_hat3, residual=True,
                    force_tiled=True, force_stream_xw=True))
    assert jnp.allclose(logits3s, ref3, atol=5e-2, rtol=5e-2)

    print("KERNEL_OK")
</pallas_src>

<mosaic_0001>
module attributes {stable_mosaic.version = 11 : i64} {
  func.func @_fused_layer_kernel(%arg0: memref<128x128xbf16, #tpu.memory_space<vmem>>, %arg1: memref<128x128xbf16, #tpu.memory_space<vmem>>, %arg2: memref<128x128xbf16, #tpu.memory_space<vmem>>, %arg3: memref<128x128xbf16, #tpu.memory_space<vmem>>) attributes {dimension_semantics = [], scalar_prefetch = 0 : i64, scratch_operands = 0 : i64, tpu.core_type = #tpu.core_type<tc>} {
    %c0 = arith.constant 0 : index
    %c0_0 = arith.constant 0 : index
    %0 = vector.load %arg1[%c0, %c0_0] : memref<128x128xbf16, #tpu.memory_space<vmem>>, vector<128x128xbf16>
    %c0_1 = arith.constant 0 : index
    %c0_2 = arith.constant 0 : index
    %1 = vector.load %arg2[%c0_1, %c0_2] : memref<128x128xbf16, #tpu.memory_space<vmem>>, vector<128x128xbf16>
    %cst = arith.constant dense<0.000000e+00> : vector<128x128xf32>
    %2 = tpu.matmul %0, %1, %cst {dimension_numbers = #tpu.dot_dimension_numbers<[1], [0], [0], [1], [0, 0, 1, 1], [], []>} : vector<128x128xbf16>, vector<128x128xbf16>, vector<128x128xf32> -> vector<128x128xf32>
    %c0_3 = arith.constant 0 : index
    %c0_4 = arith.constant 0 : index
    %3 = vector.load %arg0[%c0_3, %c0_4] : memref<128x128xbf16, #tpu.memory_space<vmem>>, vector<128x128xbf16>
    %4 = arith.truncf %2 : vector<128x128xf32> to vector<128x128xbf16>
    %cst_5 = arith.constant dense<0.000000e+00> : vector<128x128xf32>
    %5 = tpu.matmul %3, %4, %cst_5 {dimension_numbers = #tpu.dot_dimension_numbers<[1], [0], [0], [1], [0, 0, 1, 1], [], []>} : vector<128x128xbf16>, vector<128x128xbf16>, vector<128x128xf32> -> vector<128x128xf32>
    %cst_6 = arith.constant 0.000000e+00 : f32
    %6 = vector.broadcast %cst_6 : f32 to vector<128x128xf32>
    %7 = arith.maximumf %5, %6 : vector<128x128xf32>
    %8 = arith.truncf %7 : vector<128x128xf32> to vector<128x128xbf16>
    %c0_7 = arith.constant 0 : index
    %c0_8 = arith.constant 0 : index
    %9 = vector.load %arg3[%c0_7, %c0_8] : memref<128x128xbf16, #tpu.memory_space<vmem>>, vector<128x128xbf16>
    tpu.vector_store %arg3[%c0_7, %c0_8], %8 {strides = array<i32>} : memref<128x128xbf16, #tpu.memory_space<vmem>>, vector<128x128xbf16>,
    return
  }
}

</mosaic_0001>

<llo_original>
// kernel: tpu_custom_call.1
$region0: #{tpu_custom_call.1}
  #allocation0 [shape = 'u32[]', space=smem, size = 0x4, offset = 0x4, fixed_abs, tag = 'smem constant byte address 0x4 - core index']
  #allocation1 [shape = 'u32[144,128]{1,0:T(1,128)}', space=vmem, size = 0x12000, scoped, tag = 'internal scratch']
  %s0 = inlined_call_operand.hbm [shape: bf16[128,128], index: 0, kind: input, shape index: {}]
  %s1 = inlined_call_operand.hbm [shape: bf16[128,128], index: 1, kind: input, shape index: {}]
  %s2 = inlined_call_operand.hbm [shape: bf16[128,128], index: 2, kind: input, shape index: {}]
  %s3 = inlined_call_operand.hbm [shape: bf16[128,128], index: 3, kind: output, shape index: {}]
  %s4 = sld [smem:[#allocation0]]
  $region34: #{tpu_custom_call.1} parent=0
    _
  %s6 = ssub.s32 1, %s4
  %s7 = scalar_select 0, %s6, %s4
  $region1: #{tpu_custom_call.1} parent=0
    #allocation2 [shape = 'u8[32768]{0}', space=vmem, size = 0x8000, scoped, tag = 'input window, operand 0, single buffered']
    #allocation3 [shape = 's32[1]{0}', space=sflag, size = 0x4, scoped, tag = 'scoped memory for tpu_custom_call.1']
    #allocation4 [shape = 's32[1]{0}', space=sflag, size = 0x4, scoped, tag = 'scoped memory for tpu_custom_call.1']
    #allocation5 [shape = 'u8[32768]{0}', space=vmem, size = 0x8000, scoped, tag = 'input window, operand 1, single buffered']
    #allocation6 [shape = 's32[1]{0}', space=sflag, size = 0x4, scoped, tag = 'scoped memory for tpu_custom_call.1']
    #allocation7 [shape = 'u8[32768]{0}', space=vmem, size = 0x8000, scoped, tag = 'input window, operand 2, single buffered']
    #allocation8 [shape = 'u8[32768]{0}', space=vmem, size = 0x8000, scoped, tag = 'output window, operand 0, single buffered']
    %8 = vsyncpa [#allocation3], 0
    %9 = vsyncpa [#allocation6], 0
    %10 = vsyncpa [#allocation4], 0
    // Predicated region
    $region2: #{tpu_custom_call.1} parent=1 // pred_check
      _
    $region3: #{tpu_custom_call.1} parent=1 // pred_check_branch
      %12 = sbr.rel (0) target = $region5
    $region4: #{tpu_custom_call.1} parent=1 // pred_region
      %s14 = ssub.s32 1024, 1024
      %15 = vsyncadd [#allocation3], %s14
      %s16 = sshll.u32 [#allocation2], 4
      %s17 = int_to_ptr.vmem [resolvable:$true] %s16
      %22 = dma.hbm_to_vmem [thread:$0]  %s0, 1024, %s17, [#allocation3], 64, 64, 4
    $region5: #{tpu_custom_call.1} parent=1 // pred_fallthru
      _
    // Predicated region
    $region6: #{tpu_custom_call.1} parent=1 // pred_check
      _
    $region7: #{tpu_custom_call.1} parent=1 // pred_check_branch
      %24 = sbr.rel (0) target = $region9
    $region8: #{tpu_custom_call.1} parent=1 // pred_region
      %s26 = ssub.s32 1024, 1024
      %27 = vsyncadd [#allocation6], %s26
      %s28 = sshll.u32 [#allocation5], 4
      %s29 = int_to_ptr.vmem [resolvable:$true] %s28
      %34 = dma.hbm_to_vmem [thread:$0]  %s1, 1024, %s29, [#allocation6], 64, 64, 4
    $region9: #{tpu_custom_call.1} parent=1 // pred_fallthru
      _
    // Predicated region
    $region10: #{tpu_custom_call.1} parent=1 // pred_check
      _
    $region11: #{tpu_custom_call.1} parent=1 // pred_check_branch
      %36 = sbr.rel (0) target = $region13
    $region12: #{tpu_custom_call.1} parent=1 // pred_region
      %s38 = ssub.s32 1024, 1024
      %39 = vsyncadd [#allocation6], %s38
      %s40 = sshll.u32 [#allocation7], 4
      %s41 = int_to_ptr.vmem [resolvable:$true] %s40
      %46 = dma.hbm_to_vmem [thread:$0]  %s2, 1024, %s41, [#allocation6], 64, 64, 4
    $region13: #{tpu_custom_call.1} parent=1 // pred_fallthru
      _
    // Predicated region
    $region14: #{tpu_custom_call.1} parent=1 // pred_check
      _
    $region15: #{tpu_custom_call.1} parent=1 // pred_check_branch
      %48 = sbr.rel (0) target = $region17
    $region16: #{tpu_custom_call.1} parent=1 // pred_region
      %49 = dma.done [#allocation3], 1024
    $region17: #{tpu_custom_call.1} parent=1 // pred_fallthru
      _
    // Predicated region
    $region18: #{tpu_custom_call.1} parent=1 // pred_check
      _
    $region19: #{tpu_custom_call.1} parent=1 // pred_check_branch
      %51 = sbr.rel (0) target = $region21
    $region20: #{tpu_custom_call.1} parent=1 // pred_region
      %52 = dma.done [#allocation6], 1024
    $region21: #{tpu_custom_call.1} parent=1 // pred_fallthru
      _
    // Predicated region
    $region22: #{tpu_custom_call.1} parent=1 // pred_check
      _
    $region23: #{tpu_custom_call.1} parent=1 // pred_check_branch
      %54 = sbr.rel (0) target = $region25
    $region24: #{tpu_custom_call.1} parent=1 // pred_region
      %55 = dma.done [#allocation6], 1024
    $region25: #{tpu_custom_call.1} parent=1 // pred_fallthru
      _
    %v57 = vld [vmem:[#allocation5] sm:$0xf]
    %v58 = vld [vmem:[#allocation5 + $0x4] sm:$0xf]
    %v59 = vld [vmem:[#allocation5 + $0x8] sm:$0xf]
    %v60 = vld [vmem:[#allocation5 + $0xc] sm:$0xf]
    %v61 = vld [vmem:[#allocation5 + $0x10] sm:$0xf]
    %v62 = vld [vmem:[#allocation5 + $0x14] sm:$0xf]
    %v63 = vld [vmem:[#allocation5 + $0x18] sm:$0xf]
    %v64 = vld [vmem:[#allocation5 + $0x1c] sm:$0xf]
    %v65 = vld [vmem:[#allocation5 + $0x20] sm:$0xf]
    %v66 = vld [vmem:[#allocation5 + $0x24] sm:$0xf]
    %v67 = vld [vmem:[#allocation5 + $0x28] sm:$0xf]
    %v68 = vld [vmem:[#allocation5 + $0x2c] sm:$0xf]
    %v69 = vld [vmem:[#allocation5 + $0x30] sm:$0xf]
    %v70 = vld [vmem:[#allocation5 + $0x34] sm:$0xf]
    %v71 = vld [vmem:[#allocation5 + $0x38] sm:$0xf]
    %v72 = vld [vmem:[#allocation5 + $0x3c] sm:$0xf]
    %v73 = vld [vmem:[#allocation7] sm:$0xf]
    %v74 = vld [vmem:[#allocation7 + $0x4] sm:$0xf]
    %v75 = vld [vmem:[#allocation7 + $0x8] sm:$0xf]
    %v76 = vld [vmem:[#allocation7 + $0xc] sm:$0xf]
    %v77 = vld [vmem:[#allocation7 + $0x10] sm:$0xf]
    %v78 = vld [vmem:[#allocation7 + $0x14] sm:$0xf]
    %v79 = vld [vmem:[#allocation7 + $0x18] sm:$0xf]
    %v80 = vld [vmem:[#allocation7 + $0x1c] sm:$0xf]
    %v81 = vld [vmem:[#allocation7 + $0x20] sm:$0xf]
    %v82 = vld [vmem:[#allocation7 + $0x24] sm:$0xf]
    %v83 = vld [vmem:[#allocation7 + $0x28] sm:$0xf]
    %v84 = vld [vmem:[#allocation7 + $0x2c] sm:$0xf]
    %v85 = vld [vmem:[#allocation7 + $0x30] sm:$0xf]
    %v86 = vld [vmem:[#allocation7 + $0x34] sm:$0xf]
    %v87 = vld [vmem:[#allocation7 + $0x38] sm:$0xf]
    %v88 = vld [vmem:[#allocation7 + $0x3c] sm:$0xf]
    %v105 = vunpack.c.l.b16 %v57
    %v106 = vunpack.c.l.b16 %v58
    %v107 = vunpack.c.l.b16 %v59
    %v108 = vunpack.c.l.b16 %v60
    %v109 = vunpack.c.l.b16 %v61
    %v110 = vunpack.c.l.b16 %v62
    %v111 = vunpack.c.l.b16 %v63
    %v112 = vunpack.c.l.b16 %v64
    %v113 = vunpack.c.l.b16 %v65
    %v114 = vunpack.c.l.b16 %v66
    %v115 = vunpack.c.l.b16 %v67
    %v116 = vunpack.c.l.b16 %v68
    %v117 = vunpack.c.l.b16 %v69
    %v118 = vunpack.c.l.b16 %v70
    %v119 = vunpack.c.l.b16 %v71
    %v120 = vunpack.c.l.b16 %v72
    %v121 = vpack.c.b16 %v106, %v105
    %v122 = vpack.c.b16 %v108, %v107
    %v123 = vpack.c.b16 %v110, %v109
    %v124 = vpack.c.b16 %v112, %v111
    %v125 = vpack.c.b16 %v114, %v113
    %v126 = vpack.c.b16 %v116, %v115
    %v127 = vpack.c.b16 %v118, %v117
    %v128 = vpack.c.b16 %v120, %v119
    %v153 = vunpack.c.l.b16 %v73
    %v154 = vunpack.c.l.b16 %v74
    %v155 = vunpack.c.l.b16 %v75
    %v156 = vunpack.c.l.b16 %v76
    %v157 = vunpack.c.l.b16 %v77
    %v158 = vunpack.c.l.b16 %v78
    %v159 = vunpack.c.l.b16 %v79
    %v160 = vunpack.c.l.b16 %v80
    %v161 = vunpack.c.l.b16 %v81
    %v162 = vunpack.c.l.b16 %v82
    %v163 = vunpack.c.l.b16 %v83
    %v164 = vunpack.c.l.b16 %v84
    %v165 = vunpack.c.l.b16 %v85
    %v166 = vunpack.c.l.b16 %v86
    %v167 = vunpack.c.l.b16 %v87
    %v168 = vunpack.c.l.b16 %v88
    %v169 = vpack.c.b16 %v154, %v153
    %v170 = vpack.c.b16 %v156, %v155
    %v171 = vpack.c.b16 %v158, %v157
    %v172 = vpack.c.b16 %v160, %v159
    %v173 = vpack.c.b16 %v162, %v161
    %v174 = vpack.c.b16 %v164, %v163
    %v175 = vpack.c.b16 %v166, %v165
    %v176 = vpack.c.b16 %v168, %v167
    %185 = vmatprep.subr.bf16.mxu0 0
    %186 = vmatpush1.bf16.msra.mxu0 %v176
    %187 = vmatprep.subr.bf16.mxu0 0
    %188 = vmatpush1.bf16.msra.mxu0 %v175
    %189 = vmatprep.subr.bf16.mxu0 0
    %190 = vmatpush1.bf16.msra.mxu0 %v174
    %191 = vmatprep.subr.bf16.mxu0 0
    %192 = vmatpush1.bf16.msra.mxu0 %v173
    %193 = vmatprep.subr.bf16.mxu0 0
    %194 = vmatpush1.bf16.msra.mxu0 %v172
    %195 = vmatprep.subr.bf16.mxu0 0
    %196 = vmatpush1.bf16.msra.mxu0 %v171
    %197 = vmatprep.subr.bf16.mxu0 0
    %198 = vmatpush1.bf16.msra.mxu0 %v170
    %199 = vmatprep.subr.bf16.mxu0 0
    %200 = vmatpush1.bf16.msra.mxu0 %v169
    %201 = vmatprep.subr.bf16.mxu0 0
    %202 = vmatpush2.bf16.msra.mxu0 0
    %203 = vmatprep.subr.bf16.mxu0 0
    %204 = vmatpush2.bf16.msra.mxu0 0
    %205 = vmatprep.subr.bf16.mxu0 0
    %206 = vmatpush2.bf16.msra.mxu0 0
    %207 = vmatprep.subr.bf16.mxu0 0
    %208 = vmatpush2.bf16.msra.mxu0 0
    %209 = vmatprep.subr.bf16.mxu0 0
    %210 = vmatpush2.bf16.msra.mxu0 0
    %211 = vmatprep.subr.bf16.mxu0 0
    %212 = vmatpush2.bf16.msra.mxu0 0
    %213 = vmatprep.subr.bf16.mxu0 0
    %214 = vmatpush2.bf16.msra.mxu0 0
    %215 = vmatprep.subr.bf16.mxu0 0
    %216 = vmatpush2.bf16.msra.mxu0 0
    %217 = vmatprep.mubr.bf16.mxu0 0
    %218 = vmatmul.mubr.bf16.gmra.mxu0 %v121
    %v219 = vpop.f32.mrf.mxu0
    %v220 = vadd.f32 0.0, %v219
    %v221 = vpop.f32.mrf.mxu0
    %v222 = vpop.f32.mrf.mxu0
    %v223 = vadd.f32 0.0, %v222
    %v224 = vpop.f32.mrf.mxu0
    %225 = vmatprep.mubr.bf16.mxu0 0
    %226 = vmatmul.mubr.bf16.gmra.mxu0 %v122
    %v227 = vpop.f32.mrf.mxu0
    %v228 = vadd.f32 0.0, %v227
    %v229 = vpop.f32.mrf.mxu0
    %v230 = vpop.f32.mrf.mxu0
    %v231 = vadd.f32 0.0, %v230
    %v232 = vpop.f32.mrf.mxu0
    %233 = vmatprep.mubr.bf16.mxu0 0
    %234 = vmatmul.mubr.bf16.gmra.mxu0 %v123
    %v235 = vpop.f32.mrf.mxu0
    %v236 = vadd.f32 0.0, %v235
    %v237 = vpop.f32.mrf.mxu0
    %v238 = vpop.f32.mrf.mxu0
    %v239 = vadd.f32 0.0, %v238
    %v240 = vpop.f32.mrf.mxu0
    %241 = vmatprep.mubr.bf16.mxu0 0
    %242 = vmatmul.mubr.bf16.gmra.mxu0 %v124
    %v243 = vpop.f32.mrf.mxu0
    %v244 = vadd.f32 0.0, %v243
    %v245 = vpop.f32.mrf.mxu0
    %v246 = vpop.f32.mrf.mxu0
    %v247 = vadd.f32 0.0, %v246
    %v248 = vpop.f32.mrf.mxu0
    %249 = vmatprep.mubr.bf16.mxu0 0
    %250 = vmatmul.mubr.bf16.gmra.mxu0 %v125
    %v251 = vpop.f32.mrf.mxu0
    %v252 = vadd.f32 0.0, %v251
    %v253 = vpop.f32.mrf.mxu0
    %v254 = vpop.f32.mrf.mxu0
    %v255 = vadd.f32 0.0, %v254
    %v256 = vpop.f32.mrf.mxu0
    %257 = vmatprep.mubr.bf16.mxu0 0
    %258 = vmatmul.mubr.bf16.gmra.mxu0 %v126
    %v259 = vpop.f32.mrf.mxu0
    %v260 = vadd.f32 0.0, %v259
    %v261 = vpop.f32.mrf.mxu0
    %v262 = vpop.f32.mrf.mxu0
    %v263 = vadd.f32 0.0, %v262
    %v264 = vpop.f32.mrf.mxu0
    %265 = vmatprep.mubr.bf16.mxu0 0
    %266 = vmatmul.mubr.bf16.gmra.mxu0 %v127
    %v267 = vpop.f32.mrf.mxu0
    %v268 = vadd.f32 0.0, %v267
    %v269 = vpop.f32.mrf.mxu0
    %v270 = vpop.f32.mrf.mxu0
    %v271 = vadd.f32 0.0, %v270
    %v272 = vpop.f32.mrf.mxu0
    %273 = vmatprep.mubr.bf16.mxu0 0
    %274 = vmatmul.mubr.bf16.gmra.mxu0 %v128
    %v275 = vpop.f32.mrf.mxu0
    %v276 = vadd.f32 0.0, %v275
    %v277 = vpop.f32.mrf.mxu0
    %v278 = vpop.f32.mrf.mxu0
    %v279 = vadd.f32 0.0, %v278
    %v280 = vpop.f32.mrf.mxu0
    %281 = vdwg.mxu0
    %v282 = vld [vmem:[#allocation2] sm:$0xf]
    %v283 = vld [vmem:[#allocation2 + $0x4] sm:$0xf]
    %v284 = vld [vmem:[#allocation2 + $0x8] sm:$0xf]
    %v285 = vld [vmem:[#allocation2 + $0xc] sm:$0xf]
    %v286 = vld [vmem:[#allocation2 + $0x10] sm:$0xf]
    %v287 = vld [vmem:[#allocation2 + $0x14] sm:$0xf]
    %v288 = vld [vmem:[#allocation2 + $0x18] sm:$0xf]
    %v289 = vld [vmem:[#allocation2 + $0x1c] sm:$0xf]
    %v290 = vld [vmem:[#allocation2 + $0x20] sm:$0xf]
    %v291 = vld [vmem:[#allocation2 + $0x24] sm:$0xf]
    %v292 = vld [vmem:[#allocation2 + $0x28] sm:$0xf]
    %v293 = vld [vmem:[#allocation2 + $0x2c] sm:$0xf]
    %v294 = vld [vmem:[#allocation2 + $0x30] sm:$0xf]
    %v295 = vld [vmem:[#allocation2 + $0x34] sm:$0xf]
    %v296 = vld [vmem:[#allocation2 + $0x38] sm:$0xf]
    %v297 = vld [vmem:[#allocation2 + $0x3c] sm:$0xf]
    %v298 = vpack.c.bf16 %v223, %v220
    %v299 = vpack.c.bf16 %v231, %v228
    %v300 = vpack.c.bf16 %v239, %v236
    %v301 = vpack.c.bf16 %v247, %v244
    %v302 = vpack.c.bf16 %v255, %v252
    %v303 = vpack.c.bf16 %v263, %v260
    %v304 = vpack.c.bf16 %v271, %v268
    %v305 = vpack.c.bf16 %v279, %v276
    %v322 = vunpack.c.l.b16 %v282
    %v323 = vunpack.c.l.b16 %v283
    %v324 = vunpack.c.l.b16 %v284
    %v325 = vunpack.c.l.b16 %v285
    %v326 = vunpack.c.l.b16 %v286
    %v327 = vunpack.c.l.b16 %v287
    %v328 = vunpack.c.l.b16 %v288
    %v329 = vunpack.c.l.b16 %v289
    %v330 = vunpack.c.l.b16 %v290
    %v331 = vunpack.c.l.b16 %v291
    %v332 = vunpack.c.l.b16 %v292
    %v333 = vunpack.c.l.b16 %v293
    %v334 = vunpack.c.l.b16 %v294
    %v335 = vunpack.c.l.b16 %v295
    %v336 = vunpack.c.l.b16 %v296
    %v337 = vunpack.c.l.b16 %v297
    %v338 = vpack.c.b16 %v323, %v322
    %v339 = vpack.c.b16 %v325, %v324
    %v340 = vpack.c.b16 %v327, %v326
    %v341 = vpack.c.b16 %v329, %v328
    %v342 = vpack.c.b16 %v331, %v330
    %v343 = vpack.c.b16 %v333, %v332
    %v344 = vpack.c.b16 %v335, %v334
    %v345 = vpack.c.b16 %v337, %v336
    %354 = vmatprep.subr.bf16.mxu0 0
    %355 = vmatpush1.bf16.msra.mxu0 %v305
    %356 = vmatprep.subr.bf16.mxu0 0
    %357 = vmatpush1.bf16.msra.mxu0 %v304
    %358 = vmatprep.subr.bf16.mxu0 0
    %359 = vmatpush1.bf16.msra.mxu0 %v303
    %360 = vmatprep.subr.bf16.mxu0 0
    %361 = vmatpush1.bf16.msra.mxu0 %v302
    %362 = vmatprep.subr.bf16.mxu0 0
    %363 = vmatpush1.bf16.msra.mxu0 %v301
    %364 = vmatprep.subr.bf16.mxu0 0
    %365 = vmatpush1.bf16.msra.mxu0 %v300
    %366 = vmatprep.subr.bf16.mxu0 0
    %367 = vmatpush1.bf16.msra.mxu0 %v299
    %368 = vmatprep.subr.bf16.mxu0 0
    %369 = vmatpush1.bf16.msra.mxu0 %v298
    %370 = vmatprep.subr.bf16.mxu0 0
    %371 = vmatpush2.bf16.msra.mxu0 0
    %372 = vmatprep.subr.bf16.mxu0 0
    %373 = vmatpush2.bf16.msra.mxu0 0
    %374 = vmatprep.subr.bf16.mxu0 0
    %375 = vmatpush2.bf16.msra.mxu0 0
    %376 = vmatprep.subr.bf16.mxu0 0
    %377 = vmatpush2.bf16.msra.mxu0 0
    %378 = vmatprep.subr.bf16.mxu0 0
    %379 = vmatpush2.bf16.msra.mxu0 0
    %380 = vmatprep.subr.bf16.mxu0 0
    %381 = vmatpush2.bf16.msra.mxu0 0
    %382 = vmatprep.subr.bf16.mxu0 0
    %383 = vmatpush2.bf16.msra.mxu0 0
    %384 = vmatprep.subr.bf16.mxu0 0
    %385 = vmatpush2.bf16.msra.mxu0 0
    %386 = vmatprep.mubr.bf16.mxu0 0
    %387 = vmatmul.mubr.bf16.gmra.mxu0 %v338
    %v388 = vpop.f32.mrf.mxu0
    %v389 = vadd.f32 0.0, %v388
    %v390 = vpop.f32.mrf.mxu0
    %v391 = vpop.f32.mrf.mxu0
    %v392 = vadd.f32 0.0, %v391
    %v393 = vpop.f32.mrf.mxu0
    %394 = vmatprep.mubr.bf16.mxu0 0
    %395 = vmatmul.mubr.bf16.gmra.mxu0 %v339
    %v396 = vpop.f32.mrf.mxu0
    %v397 = vadd.f32 0.0, %v396
    %v398 = vpop.f32.mrf.mxu0
    %v399 = vpop.f32.mrf.mxu0
    %v400 = vadd.f32 0.0, %v399
    %v401 = vpop.f32.mrf.mxu0
    %402 = vmatprep.mubr.bf16.mxu0 0
    %403 = vmatmul.mubr.bf16.gmra.mxu0 %v340
    %v404 = vpop.f32.mrf.mxu0
    %v405 = vadd.f32 0.0, %v404
    %v406 = vpop.f32.mrf.mxu0
    %v407 = vpop.f32.mrf.mxu0
    %v408 = vadd.f32 0.0, %v407
    %v409 = vpop.f32.mrf.mxu0
    %410 = vmatprep.mubr.bf16.mxu0 0
    %411 = vmatmul.mubr.bf16.gmra.mxu0 %v341
    %v412 = vpop.f32.mrf.mxu0
    %v413 = vadd.f32 0.0, %v412
    %v414 = vpop.f32.mrf.mxu0
    %v415 = vpop.f32.mrf.mxu0
    %v416 = vadd.f32 0.0, %v415
    %v417 = vpop.f32.mrf.mxu0
    %418 = vmatprep.mubr.bf16.mxu0 0
    %419 = vmatmul.mubr.bf16.gmra.mxu0 %v342
    %v420 = vpop.f32.mrf.mxu0
    %v421 = vadd.f32 0.0, %v420
    %v422 = vpop.f32.mrf.mxu0
    %v423 = vpop.f32.mrf.mxu0
    %v424 = vadd.f32 0.0, %v423
    %v425 = vpop.f32.mrf.mxu0
    %426 = vmatprep.mubr.bf16.mxu0 0
    %427 = vmatmul.mubr.bf16.gmra.mxu0 %v343
    %v428 = vpop.f32.mrf.mxu0
    %v429 = vadd.f32 0.0, %v428
    %v430 = vpop.f32.mrf.mxu0
    %v431 = vpop.f32.mrf.mxu0
    %v432 = vadd.f32 0.0, %v431
    %v433 = vpop.f32.mrf.mxu0
    %434 = vmatprep.mubr.bf16.mxu0 0
    %435 = vmatmul.mubr.bf16.gmra.mxu0 %v344
    %v436 = vpop.f32.mrf.mxu0
    %v437 = vadd.f32 0.0, %v436
    %v438 = vpop.f32.mrf.mxu0
    %v439 = vpop.f32.mrf.mxu0
    %v440 = vadd.f32 0.0, %v439
    %v441 = vpop.f32.mrf.mxu0
    %442 = vmatprep.mubr.bf16.mxu0 0
    %443 = vmatmul.mubr.bf16.gmra.mxu0 %v345
    %v444 = vpop.f32.mrf.mxu0
    %v445 = vadd.f32 0.0, %v444
    %v446 = vpop.f32.mrf.mxu0
    %v447 = vpop.f32.mrf.mxu0
    %v448 = vadd.f32 0.0, %v447
    %v449 = vpop.f32.mrf.mxu0
    %450 = vdwg.mxu0
    %v451 = vmax.f32 %v389, 0.0
    %v452 = vmax.f32 %v392, 0.0
    %v453 = vmax.f32 %v397, 0.0
    %v454 = vmax.f32 %v400, 0.0
    %v455 = vmax.f32 %v405, 0.0
    %v456 = vmax.f32 %v408, 0.0
    %v457 = vmax.f32 %v413, 0.0
    %v458 = vmax.f32 %v416, 0.0
    %v459 = vmax.f32 %v421, 0.0
    %v460 = vmax.f32 %v424, 0.0
    %v461 = vmax.f32 %v429, 0.0
    %v462 = vmax.f32 %v432, 0.0
    %v463 = vmax.f32 %v437, 0.0
    %v464 = vmax.f32 %v440, 0.0
    %v465 = vmax.f32 %v445, 0.0
    %v466 = vmax.f32 %v448, 0.0
    %v467 = vpack.c.bf16 %v452, %v451
    %v468 = vpack.c.bf16 %v454, %v453
    %v469 = vpack.c.bf16 %v456, %v455
    %v470 = vpack.c.bf16 %v458, %v457
    %v471 = vpack.c.bf16 %v460, %v459
    %v472 = vpack.c.bf16 %v462, %v461
    %v473 = vpack.c.bf16 %v464, %v463
    %v474 = vpack.c.bf16 %v466, %v465
    %v483 = vunpack.c.l.b16 %v467
    %v484 = vunpack.c.h.b16 %v467
    %v485 = vunpack.c.l.b16 %v468
    %v486 = vunpack.c.h.b16 %v468
    %v487 = vunpack.c.l.b16 %v469
    %v488 = vunpack.c.h.b16 %v469
    %v489 = vunpack.c.l.b16 %v470
    %v490 = vunpack.c.h.b16 %v470
    %v491 = vunpack.c.l.b16 %v471
    %v492 = vunpack.c.h.b16 %v471
    %v493 = vunpack.c.l.b16 %v472
    %v494 = vunpack.c.h.b16 %v472
    %v495 = vunpack.c.l.b16 %v473
    %v496 = vunpack.c.h.b16 %v473
    %v497 = vunpack.c.l.b16 %v474
    %v498 = vunpack.c.h.b16 %v474
    %v499 = vpack.c.b16 %v483, %v483
    %v500 = vpack.c.b16 %v484, %v484
    %v501 = vpack.c.b16 %v485, %v485
    %v502 = vpack.c.b16 %v486, %v486
    %v503 = vpack.c.b16 %v487, %v487
    %v504 = vpack.c.b16 %v488, %v488
    %v505 = vpack.c.b16 %v489, %v489
    %v506 = vpack.c.b16 %v490, %v490
    %v507 = vpack.c.b16 %v491, %v491
    %v508 = vpack.c.b16 %v492, %v492
    %v509 = vpack.c.b16 %v493, %v493
    %v510 = vpack.c.b16 %v494, %v494
    %v511 = vpack.c.b16 %v495, %v495
    %v512 = vpack.c.b16 %v496, %v496
    %v513 = vpack.c.b16 %v497, %v497
    %v514 = vpack.c.b16 %v498, %v498
    %531 = vst [vmem:[#allocation8] sm:$0xf] %v499
    %532 = vst [vmem:[#allocation8 + $0x4] sm:$0xf] %v500
    %533 = vst [vmem:[#allocation8 + $0x8] sm:$0xf] %v501
    %534 = vst [vmem:[#allocation8 + $0xc] sm:$0xf] %v502
    %535 = vst [vmem:[#allocation8 + $0x10] sm:$0xf] %v503
    %536 = vst [vmem:[#allocation8 + $0x14] sm:$0xf] %v504
    %537 = vst [vmem:[#allocation8 + $0x18] sm:$0xf] %v505
    %538 = vst [vmem:[#allocation8 + $0x1c] sm:$0xf] %v506
    %539 = vst [vmem:[#allocation8 + $0x20] sm:$0xf] %v507
    %540 = vst [vmem:[#allocation8 + $0x24] sm:$0xf] %v508
    %541 = vst [vmem:[#allocation8 + $0x28] sm:$0xf] %v509
    %542 = vst [vmem:[#allocation8 + $0x2c] sm:$0xf] %v510
    %543 = vst [vmem:[#allocation8 + $0x30] sm:$0xf] %v511
    %544 = vst [vmem:[#allocation8 + $0x34] sm:$0xf] %v512
    %545 = vst [vmem:[#allocation8 + $0x38] sm:$0xf] %v513
    %546 = vst [vmem:[#allocation8 + $0x3c] sm:$0xf] %v514
    // Predicated region
    $region26: #{tpu_custom_call.1} parent=1 // pred_check
      _
    $region27: #{tpu_custom_call.1} parent=1 // pred_check_branch
      %548 = sbr.rel (0) target = $region29
    $region28: #{tpu_custom_call.1} parent=1 // pred_region
      %s550 = ssub.s32 1024, 1024
      %551 = vsyncadd [#allocation4], %s550
      %s552 = sshll.u32 [#allocation8], 4
      %s553 = int_to_ptr.vmem [resolvable:$true] %s552
      %558 = dma.vmem_to_hbm [thread:$0]  %s553, 1024, %s3, [#allocation4], 64, 64, 4
    $region29: #{tpu_custom_call.1} parent=1 // pred_fallthru
      _
    // Predicated region
    $region30: #{tpu_custom_call.1} parent=1 // pred_check
      _
    $region31: #{tpu_custom_call.1} parent=1 // pred_check_branch
      %560 = sbr.rel (0) target = $region33
    $region32: #{tpu_custom_call.1} parent=1 // pred_region
      %561 = dma.done [#allocation4], 1024
    $region33: #{tpu_custom_call.1} parent=1 // pred_fallthru
      _
    %562 = vsyncpa [#allocation3], 1
    %563 = vsyncpa [#allocation6], 1
    %564 = vsyncpa [#allocation4], 1

</llo_original>
